<compile_context>
chip_gen: v7x
topology: tpu7x:2x2x1
jax: 0.10.0
libtpu: 0.0.40
codegen_flags: <defaults>
</compile_context>

<pallas_src>
import functools

import jax
import jax.numpy as jnp
from jax.experimental import pallas as pl
from jax.experimental.pallas import tpu as pltpu


def _round_up(a, b):
    return ((a + b - 1) // b) * b


def _quantize_kernel(x_ref, embed_ref, e_half_ref, q_ref, diff_ref, ind_ref,
                     *, mm_dtype):
    x = x_ref[...].astype(jnp.float32)                 # (tm, dim)
    embed = embed_ref[...]                             # (dim, n_embed)
    e_half = e_half_ref[...].astype(jnp.float32)       # (1, n_embed)

    # argmin_j ||x - e_j||^2  ==  argmax_j ( x . e_j - 0.5*||e_j||^2 )
    # (the per-row ||x||^2 term is constant across codes and omitted).
    xe = jnp.dot(x.astype(mm_dtype), embed.astype(mm_dtype),
                 preferred_element_type=jnp.float32)    # (tm, n_embed)
    score = xe - e_half

    # argmax with first-index tie-break (matches torch.max semantics).
    col = jax.lax.broadcasted_iota(jnp.int32, score.shape, 1)
    best = jnp.max(score, axis=1, keepdims=True)
    sentinel = jnp.int32(score.shape[1])
    idx = jnp.min(jnp.where(score == best, col, sentinel),
                  axis=1, keepdims=True)                # (tm, 1) int32

    # Codebook gather as a one-hot matmul on the MXU. Contract the n_embed
    # axis of both operands so no transposed codebook copy is needed.
    # Keep the codebook in its native dtype so gathered codes are exact.
    onehot = (col == idx).astype(embed.dtype)           # (tm, n_embed)
    q = jax.lax.dot_general(
        onehot, embed,
        dimension_numbers=(((1,), (1,)), ((), ())),
        preferred_element_type=jnp.float32)              # (tm, dim)

    d = q - x
    diff = jnp.mean(d * d, axis=1, keepdims=True)        # (tm, 1)

    q_ref[...] = q.astype(q_ref.dtype)
    diff_ref[...] = diff.astype(diff_ref.dtype)
    ind_ref[...] = idx


@functools.partial(jax.jit, static_argnames=("tm", "matmul_dtype"))
def quantize_forward(x, embed, *, tm=256, matmul_dtype=jnp.float32):
    """Forward of Quantize (eval mode).

    x:     (B, H, W, dim) float32, channels-last
    embed: (dim, n_embed) float32 codebook
    Returns (quantize (B,H,W,dim), diff (B,H,W), embed_ind (B,H,W) int32).
    """
    B, H, W, dim = x.shape
    n_embed = embed.shape[1]
    N = B * H * W

    # Clamp the tile for tiny inputs (keep it a multiple of 8 sublanes), then
    # pad the row count so every grid step sees a full (tm, dim) block.
    tm = min(tm, _round_up(N, 8))
    n_pad = _round_up(N, tm)

    flat = x.reshape(N, dim)
    if n_pad != N:
        flat = jnp.pad(flat, ((0, n_pad - N), (0, 0)))

    # Hoisted, grid-invariant codebook half-norms: 0.5 * ||e_j||^2.
    e_half = 0.5 * jnp.sum(embed.astype(jnp.float32) ** 2,
                           axis=0, keepdims=True)        # (1, n_embed)

    grid = (n_pad // tm,)
    kernel = functools.partial(_quantize_kernel, mm_dtype=matmul_dtype)

    q_flat, diff_flat, ind_flat = pl.pallas_call(
        kernel,
        out_shape=(
            jax.ShapeDtypeStruct((n_pad, dim), x.dtype),
            jax.ShapeDtypeStruct((n_pad, 1), jnp.float32),
            jax.ShapeDtypeStruct((n_pad, 1), jnp.int32),
        ),
        grid_spec=pltpu.PrefetchScalarGridSpec(
            num_scalar_prefetch=0,
            grid=grid,
            in_specs=[
                pl.BlockSpec((tm, dim), lambda i: (i, 0)),
                # Constant index maps: codebook + norms fetched once, re-used.
                pl.BlockSpec((dim, n_embed), lambda i: (0, 0)),
                pl.BlockSpec((1, n_embed), lambda i: (0, 0)),
            ],
            out_specs=[
                pl.BlockSpec((tm, dim), lambda i: (i, 0)),
                pl.BlockSpec((tm, 1), lambda i: (i, 0)),
                pl.BlockSpec((tm, 1), lambda i: (i, 0)),
            ],
        ),
        compiler_params=pltpu.CompilerParams(
            # Row grid is embarrassingly parallel -> megacore / multi-TC split.
            dimension_semantics=("parallel",),
            # Raise the scoped-VMEM cap (v5e defaults to 16 MiB). Bump further
            # for very large n_embed codebooks with big tm.
            vmem_limit_bytes=32 * 1024 * 1024,
        ),
    )(flat, embed, e_half)

    quantize = q_flat[:N].reshape(B, H, W, dim)
    diff = diff_flat[:N, 0].reshape(B, H, W)
    embed_ind = ind_flat[:N, 0].reshape(B, H, W)

    # Straight-through estimator: quantize = input + stop_grad(quantize - input)
    quantize = x + jax.lax.stop_gradient(quantize - x)
    return quantize, diff, embed_ind


def _reference(x, embed):
    B, H, W, dim = x.shape
    flat = x.reshape(-1, dim).astype(jnp.float32)
    e = embed.astype(jnp.float32)
    dist = (jnp.sum(flat ** 2, axis=1, keepdims=True)
            - 2.0 * flat @ e
            + jnp.sum(e ** 2, axis=0, keepdims=True))
    ind = jnp.argmax(-dist, axis=1)
    q = e.T[ind].reshape(B, H, W, dim)
    diff = jnp.mean((q - x.astype(jnp.float32)) ** 2, axis=3)
    return q, diff, ind.reshape(B, H, W).astype(jnp.int32)


def _check(x, embed, **kwargs):
    q, diff, ind = quantize_forward(x, embed, **kwargs)
    jax.block_until_ready((q, diff, ind))
    q_ref, diff_ref, ind_ref = _reference(x, embed)
    assert jnp.allclose(q, q_ref, atol=1e-5), "quantize mismatch"
    assert jnp.allclose(diff, diff_ref, atol=1e-5), "diff mismatch"
    assert jnp.array_equal(ind, ind_ref), "index mismatch"


if __name__ == "__main__":
    key = jax.random.PRNGKey(0)
    k1, k2, k3, k4 = jax.random.split(key, 4)

    # Small config (rows < tile -> tile clamps, single grid step).
    B, H, W, dim, n_embed = 2, 4, 4, 32, 64
    x = jax.random.normal(k1, (B, H, W, dim), dtype=jnp.float32)
    embed = jax.random.normal(k2, (dim, n_embed), dtype=jnp.float32)
    _check(x, embed)                      # default tm=256 (clamped), f32 matmul

    # Multi-tile config with a ragged row count (exercises padding + grid > 1).
    B2, H2, W2, dim2, n_embed2 = 1, 9, 9, 64, 128
    x2 = jax.random.normal(k3, (B2, H2, W2, dim2), dtype=jnp.float32)
    embed2 = jax.random.normal(k4, (dim2, n_embed2), dtype=jnp.float32)
    _check(x2, embed2, tm=32)             # N=81 -> padded to 96, grid=(3,)

    print("KERNEL_OK")
</pallas_src>

<mosaic_0001>
module attributes {stable_mosaic.version = 11 : i64} {
  func.func @_quantize_kernel(%arg0: i32, %arg1: memref<32x32xf32, #tpu.memory_space<vmem>>, %arg2: memref<32x64xf32, #tpu.memory_space<vmem>>, %arg3: memref<1x64xf32, #tpu.memory_space<vmem>>, %arg4: memref<32x32xf32, #tpu.memory_space<vmem>>, %arg5: memref<32x1xf32, #tpu.memory_space<vmem>>, %arg6: memref<32x1xi32, #tpu.memory_space<vmem>>) attributes {dimension_semantics = [#tpu.dimension_semantics<parallel>], iteration_bounds = array<i64: 1>, scalar_prefetch = 0 : i64, scratch_operands = 0 : i64, tpu.core_type = #tpu.core_type<tc>, window_params = [{transform_indices = @transform_0, window_bounds = array<i64: 32, 32>}, {pipeline_mode = #tpu.pipeline_mode<synchronous>, transform_indices = @transform_1, window_bounds = array<i64: 32, 64>}, {pipeline_mode = #tpu.pipeline_mode<synchronous>, transform_indices = @transform_2, window_bounds = array<i64: 1, 64>}, {transform_indices = @transform_3, window_bounds = array<i64: 32, 32>}, {transform_indices = @transform_4, window_bounds = array<i64: 32, 1>}, {transform_indices = @transform_5, window_bounds = array<i64: 32, 1>}]} {
    %c0 = arith.constant 0 : index
    %c0_0 = arith.constant 0 : index
    %0 = vector.load %arg1[%c0, %c0_0] : memref<32x32xf32, #tpu.memory_space<vmem>>, vector<32x32xf32>
    %c0_1 = arith.constant 0 : index
    %c0_2 = arith.constant 0 : index
    %1 = vector.load %arg2[%c0_1, %c0_2] : memref<32x64xf32, #tpu.memory_space<vmem>>, vector<32x64xf32>
    %c0_3 = arith.constant 0 : index
    %c0_4 = arith.constant 0 : index
    %2 = vector.load %arg3[%c0_3, %c0_4] : memref<1x64xf32, #tpu.memory_space<vmem>>, vector<1x64xf32>
    %cst = arith.constant dense<0.000000e+00> : vector<32x64xf32>
    %3 = tpu.matmul %0, %1, %cst {dimension_numbers = #tpu.dot_dimension_numbers<[1], [0], [0], [1], [0, 0, 1, 1], [], []>} : vector<32x32xf32>, vector<32x64xf32>, vector<32x64xf32> -> vector<32x64xf32>
    %4 = vector.broadcast %2 : vector<1x64xf32> to vector<32x64xf32>
    %5 = arith.subf %3, %4 : vector<32x64xf32>
    %6 = tpu.iota {dimensions = array<i32: 1>} : vector<32x64xi32>
    %cst_5 = arith.constant dense<0xFF800000> : vector<32xf32>
    %7 = vector.multi_reduction <maximumf>, %5, %cst_5 [1] : vector<32x64xf32> to vector<32xf32>
    %8 = vector.shape_cast %7 : vector<32xf32> to vector<32x1xf32>
    %9 = vector.broadcast %8 : vector<32x1xf32> to vector<32x64xf32>
    %10 = arith.cmpf oeq, %5, %9 : vector<32x64xf32>
    %c64_i32 = arith.constant 64 : i32
    %11 = vector.broadcast %c64_i32 : i32 to vector<32x64xi32>
    %12 = arith.select %10, %6, %11 : vector<32x64xi1>, vector<32x64xi32>
    %cst_6 = arith.constant dense<2147483647> : vector<32xi32>
    %13 = vector.multi_reduction <minsi>, %12, %cst_6 [1] : vector<32x64xi32> to vector<32xi32>
    %14 = vector.shape_cast %13 : vector<32xi32> to vector<32x1xi32>
    %15 = vector.broadcast %14 : vector<32x1xi32> to vector<32x64xi32>
    %16 = arith.cmpi eq, %6, %15 : vector<32x64xi32>
    %17 = arith.extui %16 : vector<32x64xi1> to vector<32x64xi32>
    %18 = arith.sitofp %17 : vector<32x64xi32> to vector<32x64xf32>
    %cst_7 = arith.constant dense<0.000000e+00> : vector<32x32xf32>
    %19 = tpu.matmul %18, %1, %cst_7 {dimension_numbers = #tpu.dot_dimension_numbers<[1], [1], [0], [0], [0, 0, 1, 0], [], []>} : vector<32x64xf32>, vector<32x64xf32>, vector<32x32xf32> -> vector<32x32xf32>
    %20 = arith.subf %19, %0 : vector<32x32xf32>
    %21 = arith.mulf %20, %20 : vector<32x32xf32>
    %cst_8 = arith.constant dense<0.000000e+00> : vector<32xf32>
    %22 = vector.multi_reduction <add>, %21, %cst_8 [1] : vector<32x32xf32> to vector<32xf32>
    %23 = vector.shape_cast %22 : vector<32xf32> to vector<32x1xf32>
    %cst_9 = arith.constant 3.200000e+01 : f32
    %24 = vector.broadcast %cst_9 : f32 to vector<32x1xf32>
    %25 = arith.divf %23, %24 : vector<32x1xf32>
    %c0_10 = arith.constant 0 : index
    %c0_11 = arith.constant 0 : index
    %26 = vector.load %arg4[%c0_10, %c0_11] : memref<32x32xf32, #tpu.memory_space<vmem>>, vector<32x32xf32>
    tpu.vector_store %arg4[%c0_10, %c0_11], %19 {strides = array<i32>} : memref<32x32xf32, #tpu.memory_space<vmem>>, vector<32x32xf32>,
    %c0_12 = arith.constant 0 : index
    %c0_13 = arith.constant 0 : index
    %27 = vector.load %arg5[%c0_12, %c0_13] : memref<32x1xf32, #tpu.memory_space<vmem>>, vector<32x1xf32>
    tpu.vector_store %arg5[%c0_12, %c0_13], %25 {strides = array<i32>} : memref<32x1xf32, #tpu.memory_space<vmem>>, vector<32x1xf32>,
    %c0_14 = arith.constant 0 : index
    %c0_15 = arith.constant 0 : index
    %28 = vector.load %arg6[%c0_14, %c0_15] : memref<32x1xi32, #tpu.memory_space<vmem>>, vector<32x1xi32>
    tpu.vector_store %arg6[%c0_14, %c0_15], %14 {strides = array<i32>} : memref<32x1xi32, #tpu.memory_space<vmem>>, vector<32x1xi32>,
    return
  }
  func.func @transform_0(%arg0: i32) -> (i32, i32) {
    %c0_i32 = arith.constant 0 : i32
    %c0_i32_0 = arith.constant 0 : i32
    return %arg0, %c0_i32 : i32, i32
  }
  func.func @transform_1(%arg0: i32) -> (i32, i32) {
    %c0_i32 = arith.constant 0 : i32
    %c0_i32_0 = arith.constant 0 : i32
    %c0_i32_1 = arith.constant 0 : i32
    return %c0_i32, %c0_i32_0 : i32, i32
  }
  func.func @transform_2(%arg0: i32) -> (i32, i32) {
    %c0_i32 = arith.constant 0 : i32
    %c0_i32_0 = arith.constant 0 : i32
    %c0_i32_1 = arith.constant 0 : i32
    return %c0_i32, %c0_i32_0 : i32, i32
  }
  func.func @transform_3(%arg0: i32) -> (i32, i32) {
    %c0_i32 = arith.constant 0 : i32
    %c0_i32_0 = arith.constant 0 : i32
    return %arg0, %c0_i32 : i32, i32
  }
  func.func @transform_4(%arg0: i32) -> (i32, i32) {
    %c0_i32 = arith.constant 0 : i32
    %c0_i32_0 = arith.constant 0 : i32
    return %arg0, %c0_i32 : i32, i32
  }
  func.func @transform_5(%arg0: i32) -> (i32, i32) {
    %c0_i32 = arith.constant 0 : i32
    %c0_i32_0 = arith.constant 0 : i32
    return %arg0, %c0_i32 : i32, i32
  }
}

</mosaic_0001>

<llo_original>
// kernel: squeeze.3
$region0: #{squeeze.3}
  %s0 = inlined_call_operand.vmem [shape: s32[32], index: 0, kind: input, shape index: {}]
  %s1 = inlined_call_operand.hbm [shape: s32[2,4,4], index: 1, kind: output, shape index: {}]
  $region1: #{squeeze.3} parent=0
    #allocation0 [shape = 'u8[4096]{0}', space=vmem, size = 0x1000, scoped, tag = 'operand span for operand 1']
    #allocation1 [shape = 's32[1]{0}', space=sflag, size = 0x4, scoped, tag = 'scoped memory for squeeze.3']
    #allocation2 [shape = 'u8[8192]{0}', space=vmem, size = 0x2000, scoped, tag = 'scoped mem for output reshape']
    #allocation3 [shape = 'u8[4096]{0}', space=vmem, size = 0x1000, scoped, tag = 'scoped mem for input reshape']
    %2 = vsyncpa [#allocation1], 0
    %s4 = sshllo.u32 0, 1
    %v5 = vld [vmem:[%s0] sm:%s4]
    %6 = vst [vmem:[#allocation3] sm:%s4] %v5
    %v7 = vld [vmem:[#allocation3] sm:$0x1]
    %vm8 = vcmask 31744
    %9 = vst.msk [vmem:[#allocation2] sm:$0x1] %vm8, %v7
    %v10 = vld [vmem:[#allocation3] sm:$0x1]
    %11 = vrot.lane.b32.xlu0 %v10, 124
    %v12 = vpop.permute.xlu0 %11
    %vm13 = vcmask 31744
    %s14 = scalar_lea.vmem [#allocation2], 1
    %15 = vst.msk [vmem:[%s14] sm:$0x1] %vm13, %v12
    %v16 = vld [vmem:[#allocation3] sm:$0x1]
    %17 = vrot.lane.b32.xlu0 %v16, 120
    %v18 = vpop.permute.xlu0 %17
    %vm19 = vcmask 31744
    %s20 = scalar_lea.vmem [#allocation2], 2
    %21 = vst.msk [vmem:[%s20] sm:$0x1] %vm19, %v18
    %v22 = vld [vmem:[#allocation3] sm:$0x1]
    %23 = vrot.lane.b32.xlu0 %v22, 116
    %v24 = vpop.permute.xlu0 %23
    %vm25 = vcmask 31744
    %s26 = scalar_lea.vmem [#allocation2], 3
    %27 = vst.msk [vmem:[%s26] sm:$0x1] %vm25, %v24
    %v28 = vld [vmem:[#allocation3] sm:$0x1]
    %29 = vrot.lane.b32.xlu0 %v28, 112
    %v30 = vpop.permute.xlu0 %29
    %vm31 = vcmask 31744
    %s32 = scalar_lea.vmem [#allocation2], 8
    %33 = vst.msk [vmem:[%s32] sm:$0x1] %vm31, %v30
    %v34 = vld [vmem:[#allocation3] sm:$0x1]
    %35 = vrot.lane.b32.xlu0 %v34, 108
    %v36 = vpop.permute.xlu0 %35
    %vm37 = vcmask 31744
    %s38 = scalar_lea.vmem [#allocation2], 9
    %39 = vst.msk [vmem:[%s38] sm:$0x1] %vm37, %v36
    %v40 = vld [vmem:[#allocation3] sm:$0x1]
    %41 = vrot.lane.b32.xlu0 %v40, 104
    %v42 = vpop.permute.xlu0 %41
    %vm43 = vcmask 31744
    %s44 = scalar_lea.vmem [#allocation2], 10
    %45 = vst.msk [vmem:[%s44] sm:$0x1] %vm43, %v42
    %v46 = vld [vmem:[#allocation3] sm:$0x1]
    %47 = vrot.lane.b32.xlu0 %v46, 100
    %v48 = vpop.permute.xlu0 %47
    %vm49 = vcmask 31744
    %s50 = scalar_lea.vmem [#allocation2], 11
    %51 = vst.msk [vmem:[%s50] sm:$0x1] %vm49, %v48
    %s53 = sshllo.u32 0, 4
    %v55 = vld [vmem:[#allocation2] sm:%s53]
    %s56 = sshllo.u32 0, 4
    %57 = vst [vmem:[#allocation0] sm:%s56] %v55
    %s58 = scalar_lea.vmem [#allocation2], 8
    %v59 = vld [vmem:[%s58] sm:%s53]
    %s60 = sshllo.u32 0, 4
    %s61 = scalar_lea.vmem [#allocation0], 4
    %62 = vst [vmem:[%s61] sm:%s60] %v59
    %s64 = ssub.s32 128, 128
    %65 = vsyncadd [#allocation1], %s64
    %s67 = sshll.u32 [#allocation0], 4
    %s68 = int_to_ptr.vmem [resolvable:$true] %s67
    %70 = dma.vmem_to_hbm [thread:$0]  %s68, 128, %s1, [#allocation1]
    %71 = dma.done [#allocation1], 128
    %72 = vsyncpa [#allocation1], 1

// kernel: squeeze.2
$region0: #{squeeze.2}
  %s0 = inlined_call_operand.vmem [shape: f32[32], index: 0, kind: input, shape index: {}]
  %s1 = inlined_call_operand.hbm [shape: f32[2,4,4], index: 1, kind: output, shape index: {}]
  $region1: #{squeeze.2} parent=0
    #allocation0 [shape = 'u8[4096]{0}', space=vmem, size = 0x1000, scoped, tag = 'operand span for operand 1']
    #allocation1 [shape = 's32[1]{0}', space=sflag, size = 0x4, scoped, tag = 'scoped memory for squeeze.2']
    #allocation2 [shape = 'u8[8192]{0}', space=vmem, size = 0x2000, scoped, tag = 'scoped mem for output reshape']
    #allocation3 [shape = 'u8[4096]{0}', space=vmem, size = 0x1000, scoped, tag = 'scoped mem for input reshape']
    %2 = vsyncpa [#allocation1], 0
    %s4 = sshllo.u32 0, 1
    %v5 = vld [vmem:[%s0] sm:%s4]
    %6 = vst [vmem:[#allocation3] sm:%s4] %v5
    %v7 = vld [vmem:[#allocation3] sm:$0x1]
    %vm8 = vcmask 31744
    %9 = vst.msk [vmem:[#allocation2] sm:$0x1] %vm8, %v7
    %v10 = vld [vmem:[#allocation3] sm:$0x1]
    %11 = vrot.lane.b32.xlu0 %v10, 124
    %v12 = vpop.permute.xlu0 %11
    %vm13 = vcmask 31744
    %s14 = scalar_lea.vmem [#allocation2], 1
    %15 = vst.msk [vmem:[%s14] sm:$0x1] %vm13, %v12
    %v16 = vld [vmem:[#allocation3] sm:$0x1]
    %17 = vrot.lane.b32.xlu0 %v16, 120
    %v18 = vpop.permute.xlu0 %17
    %vm19 = vcmask 31744
    %s20 = scalar_lea.vmem [#allocation2], 2
    %21 = vst.msk [vmem:[%s20] sm:$0x1] %vm19, %v18
    %v22 = vld [vmem:[#allocation3] sm:$0x1]
    %23 = vrot.lane.b32.xlu0 %v22, 116
    %v24 = vpop.permute.xlu0 %23
    %vm25 = vcmask 31744
    %s26 = scalar_lea.vmem [#allocation2], 3
    %27 = vst.msk [vmem:[%s26] sm:$0x1] %vm25, %v24
    %v28 = vld [vmem:[#allocation3] sm:$0x1]
    %29 = vrot.lane.b32.xlu0 %v28, 112
    %v30 = vpop.permute.xlu0 %29
    %vm31 = vcmask 31744
    %s32 = scalar_lea.vmem [#allocation2], 8
    %33 = vst.msk [vmem:[%s32] sm:$0x1] %vm31, %v30
    %v34 = vld [vmem:[#allocation3] sm:$0x1]
    %35 = vrot.lane.b32.xlu0 %v34, 108
    %v36 = vpop.permute.xlu0 %35
    %vm37 = vcmask 31744
    %s38 = scalar_lea.vmem [#allocation2], 9
    %39 = vst.msk [vmem:[%s38] sm:$0x1] %vm37, %v36
    %v40 = vld [vmem:[#allocation3] sm:$0x1]
    %41 = vrot.lane.b32.xlu0 %v40, 104
    %v42 = vpop.permute.xlu0 %41
    %vm43 = vcmask 31744
    %s44 = scalar_lea.vmem [#allocation2], 10
    %45 = vst.msk [vmem:[%s44] sm:$0x1] %vm43, %v42
    %v46 = vld [vmem:[#allocation3] sm:$0x1]
    %47 = vrot.lane.b32.xlu0 %v46, 100
    %v48 = vpop.permute.xlu0 %47
    %vm49 = vcmask 31744
    %s50 = scalar_lea.vmem [#allocation2], 11
    %51 = vst.msk [vmem:[%s50] sm:$0x1] %vm49, %v48
    %s53 = sshllo.u32 0, 4
    %v55 = vld [vmem:[#allocation2] sm:%s53]
    %s56 = sshllo.u32 0, 4
    %57 = vst [vmem:[#allocation0] sm:%s56] %v55
    %s58 = scalar_lea.vmem [#allocation2], 8
    %v59 = vld [vmem:[%s58] sm:%s53]
    %s60 = sshllo.u32 0, 4
    %s61 = scalar_lea.vmem [#allocation0], 4
    %62 = vst [vmem:[%s61] sm:%s60] %v59
    %s64 = ssub.s32 128, 128
    %65 = vsyncadd [#allocation1], %s64
    %s67 = sshll.u32 [#allocation0], 4
    %s68 = int_to_ptr.vmem [resolvable:$true] %s67
    %70 = dma.vmem_to_hbm [thread:$0]  %s68, 128, %s1, [#allocation1]
    %71 = dma.done [#allocation1], 128
    %72 = vsyncpa [#allocation1], 1

// kernel: quantize_forward.1
$region0: #{quantize_forward.1}
  #allocation0 [shape = 'u32[]', space=smem, size = 0x4, offset = 0x4, fixed_abs, tag = 'smem constant byte address 0x4 - core index']
  #allocation1 [shape = 'u32[144,128]{1,0:T(1,128)}', space=vmem, size = 0x12000, scoped, tag = 'internal scratch']
  %s0 = inlined_call_operand.vmem [shape: f32[32,32], index: 0, kind: input, shape index: {}]
  %s1 = inlined_call_operand.hbm [shape: f32[32,64], index: 1, kind: input, shape index: {}]
  %s2 = inlined_call_operand.vmem [shape: f32[1,64], index: 2, kind: input, shape index: {}]
  %s3 = inlined_call_operand.vmem [shape: f32[32,32], index: 3, kind: output, shape index: {0}]
  %s4 = inlined_call_operand.vmem [shape: f32[32,1], index: 4, kind: output, shape index: {1}]
  %s5 = inlined_call_operand.vmem [shape: s32[32,1], index: 5, kind: output, shape index: {2}]
  %6 = xla_tuple %s3, %s4, %s5
  %s7 = sld [smem:[#allocation0]]
  $region42: #{quantize_forward.1} parent=0
    _
  %s9 = ssub.s32 1, %s7
  %s10 = scalar_select 0, %s9, %s7
  $region1: #{quantize_forward.1} parent=0
    #allocation2 [shape = 'u8[16384]{0}', space=vmem, size = 0x4000, scoped, tag = 'input window, operand 1, single buffered']
    #allocation3 [shape = 's32[1]{0}', space=sflag, size = 0x4, scoped, tag = 'scoped memory for quantize_forward.1']
    %11 = vsyncpa [#allocation3], 0
    // Predicated region
    $region2: #{quantize_forward.1} parent=1 // pred_check
      _
    $region3: #{quantize_forward.1} parent=1 // pred_check_branch
      %13 = sbr.rel (0) target = $region5
    $region4: #{quantize_forward.1} parent=1 // pred_region
      _
    $region5: #{quantize_forward.1} parent=1 // pred_fallthru
      _
    // Predicated region
    $region6: #{quantize_forward.1} parent=1 // pred_check
      _
    $region7: #{quantize_forward.1} parent=1 // pred_check_branch
      %15 = sbr.rel (0) target = $region9
    $region8: #{quantize_forward.1} parent=1 // pred_region
      %s17 = ssub.s32 512, 512
      %18 = vsyncadd [#allocation3], %s17
      %s19 = sshll.u32 [#allocation2], 4
      %s20 = int_to_ptr.vmem [resolvable:$true] %s19
      %25 = dma.hbm_to_vmem [thread:$0]  %s1, 512, %s20, [#allocation3], 128, 128, 8
    $region9: #{quantize_forward.1} parent=1 // pred_fallthru
      _
    // Predicated region
    $region10: #{quantize_forward.1} parent=1 // pred_check
      _
    $region11: #{quantize_forward.1} parent=1 // pred_check_branch
      %27 = sbr.rel (0) target = $region13
    $region12: #{quantize_forward.1} parent=1 // pred_region
      _
    $region13: #{quantize_forward.1} parent=1 // pred_fallthru
      _
    // Predicated region
    $region14: #{quantize_forward.1} parent=1 // pred_check
      _
    $region15: #{quantize_forward.1} parent=1 // pred_check_branch
      %29 = sbr.rel (0) target = $region17
    $region16: #{quantize_forward.1} parent=1 // pred_region
      %30 = dma.done [#allocation3], 512
    $region17: #{quantize_forward.1} parent=1 // pred_fallthru
      _
    %v31 = vld [vmem:[%s0] sm:$0xff]
    %v32 = vld [vmem:[%s0 + $0x8] sm:$0xff]
    %v33 = vld [vmem:[%s0 + $0x10] sm:$0xff]
    %v34 = vld [vmem:[%s0 + $0x18] sm:$0xff]
    %v35 = vld [vmem:[#allocation2] sm:$0xff]
    %v36 = vld [vmem:[#allocation2 + $0x8] sm:$0xff]
    %v37 = vld [vmem:[#allocation2 + $0x10] sm:$0xff]
    %v38 = vld [vmem:[#allocation2 + $0x18] sm:$0xff]
    %v39 = vld [vmem:[%s2] sm:$0x1]
    %vm40 = vcmask 261120
    %v42 = vsel %vm40, %v31, 0
    %v45 = vsel %vm40, %v32, 0
    %v48 = vsel %vm40, %v33, 0
    %v51 = vsel %vm40, %v34, 0
    %53 = vmatprep.subr.mxu0 0.0
    %54 = vmatpush1.msra.mxu0 %v35
    %55 = vmatprep.subr.mxu0 0.0
    %56 = vmatpush1.msra.mxu0 %v36
    %57 = vmatprep.subr.mxu0 0.0
    %58 = vmatpush1.msra.mxu0 %v37
    %59 = vmatprep.subr.mxu0 0.0
    %60 = vmatpush1.msra.mxu0 %v38
    %61 = vmatprep.subr.mxu0 0.0
    %62 = vmatpush1.msra.mxu0 0.0
    %63 = vmatprep.subr.mxu0 0.0
    %64 = vmatpush1.msra.mxu0 0.0
    %65 = vmatprep.subr.mxu0 0.0
    %66 = vmatpush1.msra.mxu0 0.0
    %67 = vmatprep.subr.mxu0 0.0
    %68 = vmatpush1.msra.mxu0 0.0
    %69 = vmatprep.subr.mxu0 0.0
    %70 = vmatpush1.msra.mxu0 0.0
    %71 = vmatprep.subr.mxu0 0.0
    %72 = vmatpush1.msra.mxu0 0.0
    %73 = vmatprep.subr.mxu0 0.0
    %74 = vmatpush1.msra.mxu0 0.0
    %75 = vmatprep.subr.mxu0 0.0
    %76 = vmatpush1.msra.mxu0 0.0
    %77 = vmatprep.subr.mxu0 0.0
    %78 = vmatpush1.msra.mxu0 0.0
    %79 = vmatprep.subr.mxu0 0.0
    %80 = vmatpush1.msra.mxu0 0.0
    %81 = vmatprep.subr.mxu0 0.0
    %82 = vmatpush1.msra.mxu0 0.0
    %83 = vmatprep.subr.mxu0 0.0
    %84 = vmatpush1.msra.mxu0 0.0
    %85 = vmatprep.subr.mxu0 0.0
    %86 = vmatpush1.msra.mxu0 0.0
    %87 = vmatprep.subr.mxu0 0.0
    %88 = vmatpush1.msra.mxu0 0.0
    %89 = vmatprep.subr.mxu0 0.0
    %90 = vmatpush1.msra.mxu0 0.0
    %91 = vmatprep.subr.mxu0 0.0
    %92 = vmatpush1.msra.mxu0 0.0
    %93 = vmatprep.subr.mxu0 0.0
    %94 = vmatpush1.msra.mxu0 0.0
    %95 = vmatprep.subr.mxu0 0.0
    %96 = vmatpush1.msra.mxu0 0.0
    %97 = vmatprep.subr.mxu0 0.0
    %98 = vmatpush1.msra.mxu0 0.0
    %99 = vmatprep.subr.mxu0 0.0
    %100 = vmatpush1.msra.mxu0 0.0
    %101 = vmatprep.subr.mxu0 0.0
    %102 = vmatpush1.msra.mxu0 0.0
    %103 = vmatprep.subr.mxu0 0.0
    %104 = vmatpush1.msra.mxu0 0.0
    %105 = vmatprep.subr.mxu0 0.0
    %106 = vmatpush1.msra.mxu0 0.0
    %107 = vmatprep.subr.mxu0 0.0
    %108 = vmatpush1.msra.mxu0 0.0
    %109 = vmatprep.subr.mxu0 0.0
    %110 = vmatpush1.msra.mxu0 0.0
    %111 = vmatprep.subr.mxu0 0.0
    %112 = vmatpush1.msra.mxu0 0.0
    %113 = vmatprep.subr.mxu0 0.0
    %114 = vmatpush1.msra.mxu0 0.0
    %115 = vmatprep.subr.mxu0 0.0
    %116 = vmatpush1.msra.mxu0 0.0
    %117 = vmatprep.mubr.f32.mxu0 0.0
    %118 = vmatmul.mubr.f32.gmra.mrb[0].mxu0 %v42
    %v119 = vpop.f32.mrb[0].mxu0
    %v120 = vadd.f32 0.0, %v119
    %v121 = vpop.f32.mrb[0].mxu0
    %122 = vmatprep.mubr.f32.mxu0 0.0
    %123 = vmatmul.mubr.f32.gmra.mrb[0].mxu0 %v45
    %v124 = vpop.f32.mrb[0].mxu0
    %v125 = vadd.f32 0.0, %v124
    %v126 = vpop.f32.mrb[0].mxu0
    %127 = vmatprep.mubr.f32.mxu0 0.0
    %128 = vmatmul.mubr.f32.gmra.mrb[0].mxu0 %v48
    %v129 = vpop.f32.mrb[0].mxu0
    %v130 = vadd.f32 0.0, %v129
    %v131 = vpop.f32.mrb[0].mxu0
    %132 = vmatprep.mubr.f32.mxu0 0.0
    %133 = vmatmul.mubr.f32.gmra.mrb[0].mxu0 %v51
    %v134 = vpop.f32.mrb[0].mxu0
    %v135 = vadd.f32 0.0, %v134
    %v136 = vpop.f32.mrb[0].mxu0
    %137 = vdwg.mxu0
    %v139 = vlaneseq
    %v140 = vshrl.u32 %v139, 7
    %v141 = vsub.s32 0, %v140
    %v142 = vrot.slane %v39, %v141
    %v144 = vsub.f32 %v120, %v142
    %v145 = vsub.f32 %v125, %v142
    %v146 = vsub.f32 %v130, %v142
    %v147 = vsub.f32 %v135, %v142
    %v148 = vlaneseq
    %v149 = vand.u32 %v148, 127
    %vm150 = vcmask 523264
    %v151 = vsel %vm150, %v144, -inf
    %152 = vmax.xlane.f32.xlu0 %v151
    %v153 = vpop.xlane.xlu0 %152
    %v154 = vsel %vm150, %v145, -inf
    %155 = vmax.xlane.f32.xlu0 %v154
    %v156 = vpop.xlane.xlu0 %155
    %v157 = vsel %vm150, %v146, -inf
    %158 = vmax.xlane.f32.xlu0 %v157
    %v159 = vpop.xlane.xlu0 %158
    %v160 = vsel %vm150, %v147, -inf
    %161 = vmax.xlane.f32.xlu0 %v160
    %v162 = vpop.xlane.xlu0 %161
    %vm163 = vcmp.eq.f32.partialorder %v144, %v153
    %vm164 = vcmp.eq.f32.partialorder %v145, %v156
    %vm165 = vcmp.eq.f32.partialorder %v146, %v159
    %vm166 = vcmp.eq.f32.partialorder %v147, %v162
    %v167 = vsel %vm163, %v149, 64
    %v168 = vsel %vm164, %v149, 64
    %v169 = vsel %vm165, %v149, 64
    %v170 = vsel %vm166, %v149, 64
    %v171 = vsel %vm150, %v167, 2147483647
    %v172 = vand.u32 %v171, 65535
    %v173 = vshra.s32 %v171, 16
    %v174 = vcvt.s32.f32 %v172
    %v175 = vcvt.s32.f32 %v173
    %176 = vmin.xlane.f32.xlu0 %v175
    %v177 = vpop.xlane.xlu0 %176
    %vm178 = vcmp.eq.f32.partialorder %v175, %v177
    %v179 = vsel %vm178, %v174, inf
    %180 = vmin.xlane.f32.xlu0 %v179
    %v181 = vpop.xlane.xlu0 %180
    %v182 = vcvt.f32.s32 %v181
    %v183 = vcvt.f32.s32 %v177
    %v184 = vshll.u32 %v183, 16
    %v185 = vadd.s32 %v184, %v182
    %v186 = vsel %vm150, %v168, 2147483647
    %v187 = vand.u32 %v186, 65535
    %v188 = vshra.s32 %v186, 16
    %v189 = vcvt.s32.f32 %v187
    %v190 = vcvt.s32.f32 %v188
    %191 = vmin.xlane.f32.xlu0 %v190
    %v192 = vpop.xlane.xlu0 %191
    %vm193 = vcmp.eq.f32.partialorder %v190, %v192
    %v194 = vsel %vm193, %v189, inf
    %195 = vmin.xlane.f32.xlu0 %v194
    %v196 = vpop.xlane.xlu0 %195
    %v197 = vcvt.f32.s32 %v196
    %v198 = vcvt.f32.s32 %v192
    %v199 = vshll.u32 %v198, 16
    %v200 = vadd.s32 %v199, %v197
    %v201 = vsel %vm150, %v169, 2147483647
    %v202 = vand.u32 %v201, 65535
    %v203 = vshra.s32 %v201, 16
    %v204 = vcvt.s32.f32 %v202
    %v205 = vcvt.s32.f32 %v203
    %206 = vmin.xlane.f32.xlu0 %v205
    %v207 = vpop.xlane.xlu0 %206
    %vm208 = vcmp.eq.f32.partialorder %v205, %v207
    %v209 = vsel %vm208, %v204, inf
    %210 = vmin.xlane.f32.xlu0 %v209
    %v211 = vpop.xlane.xlu0 %210
    %v212 = vcvt.f32.s32 %v211
    %v213 = vcvt.f32.s32 %v207
    %v214 = vshll.u32 %v213, 16
    %v215 = vadd.s32 %v214, %v212
    %v216 = vsel %vm150, %v170, 2147483647
    %v217 = vand.u32 %v216, 65535
    %v218 = vshra.s32 %v216, 16
    %v219 = vcvt.s32.f32 %v217
    %v220 = vcvt.s32.f32 %v218
    %221 = vmin.xlane.f32.xlu0 %v220
    %v222 = vpop.xlane.xlu0 %221
    %vm223 = vcmp.eq.f32.partialorder %v220, %v222
    %v224 = vsel %vm223, %v219, inf
    %225 = vmin.xlane.f32.xlu0 %v224
    %v226 = vpop.xlane.xlu0 %225
    %v227 = vcvt.f32.s32 %v226
    %v228 = vcvt.f32.s32 %v222
    %v229 = vshll.u32 %v228, 16
    %v230 = vadd.s32 %v229, %v227
    %vm231 = vcmp.eq.s32.totalorder %v149, %v185
    %vm232 = vcmp.eq.s32.totalorder %v149, %v200
    %vm233 = vcmp.eq.s32.totalorder %v149, %v215
    %vm234 = vcmp.eq.s32.totalorder %v149, %v230
    %v235 = vsel %vm231, 1, 0
    %v236 = vsel %vm232, 1, 0
    %v237 = vsel %vm233, 1, 0
    %v238 = vsel %vm234, 1, 0
    %v239 = vcvt.s32.f32 %v235
    %v240 = vcvt.s32.f32 %v236
    %v241 = vcvt.s32.f32 %v237
    %v242 = vcvt.s32.f32 %v238
    %v244 = vsel %vm150, %v239, 0
    %v247 = vsel %vm150, %v240, 0
    %v250 = vsel %vm150, %v241, 0
    %v253 = vsel %vm150, %v242, 0
    %v256 = vsel %vm150, %v35, 0
    %v259 = vsel %vm150, %v36, 0
    %v262 = vsel %vm150, %v37, 0
    %v265 = vsel %vm150, %v38, 0
    %267 = vmatprep.subr.mxu0 0.0
    %268 = vmatpush1.xpose.msra.mxu0 %v256
    %269 = vmatprep.subr.mxu0 0.0
    %270 = vmatpush1.xpose.msra.mxu0 %v259
    %271 = vmatprep.subr.mxu0 0.0
    %272 = vmatpush1.xpose.msra.mxu0 %v262
    %273 = vmatprep.subr.mxu0 0.0
    %274 = vmatpush1.xpose.msra.mxu0 %v265
    %275 = vmatprep.subr.mxu0 0.0
    %276 = vmatpush1.xpose.msra.mxu0 0.0
    %277 = vmatprep.subr.mxu0 0.0
    %278 = vmatpush1.xpose.msra.mxu0 0.0
    %279 = vmatprep.subr.mxu0 0.0
    %280 = vmatpush1.xpose.msra.mxu0 0.0
    %281 = vmatprep.subr.mxu0 0.0
    %282 = vmatpush1.xpose.msra.mxu0 0.0
    %283 = vmatprep.subr.mxu0 0.0
    %284 = vmatpush1.xpose.msra.mxu0 0.0
    %285 = vmatprep.subr.mxu0 0.0
    %286 = vmatpush1.xpose.msra.mxu0 0.0
    %287 = vmatprep.subr.mxu0 0.0
    %288 = vmatpush1.xpose.msra.mxu0 0.0
    %289 = vmatprep.subr.mxu0 0.0
    %290 = vmatpush1.xpose.msra.mxu0 0.0
    %291 = vmatprep.subr.mxu0 0.0
    %292 = vmatpush1.xpose.msra.mxu0 0.0
    %293 = vmatprep.subr.mxu0 0.0
    %294 = vmatpush1.xpose.msra.mxu0 0.0
    %295 = vmatprep.subr.mxu0 0.0
    %296 = vmatpush1.xpose.msra.mxu0 0.0
    %297 = vmatprep.subr.mxu0 0.0
    %298 = vmatpush1.xpose.msra.mxu0 0.0
    %299 = vmatprep.subr.mxu0 0.0
    %300 = vmatpush1.xpose.msra.mxu0 0.0
    %301 = vmatprep.subr.mxu0 0.0
    %302 = vmatpush1.xpose.msra.mxu0 0.0
    %303 = vmatprep.subr.mxu0 0.0
    %304 = vmatpush1.xpose.msra.mxu0 0.0
    %305 = vmatprep.subr.mxu0 0.0
    %306 = vmatpush1.xpose.msra.mxu0 0.0
    %307 = vmatprep.subr.mxu0 0.0
    %308 = vmatpush1.xpose.msra.mxu0 0.0
    %309 = vmatprep.subr.mxu0 0.0
    %310 = vmatpush1.xpose.msra.mxu0 0.0
    %311 = vmatprep.subr.mxu0 0.0
    %312 = vmatpush1.xpose.msra.mxu0 0.0
    %313 = vmatprep.subr.mxu0 0.0
    %314 = vmatpush1.xpose.msra.mxu0 0.0
    %315 = vmatprep.subr.mxu0 0.0
    %316 = vmatpush1.xpose.msra.mxu0 0.0
    %317 = vmatprep.subr.mxu0 0.0
    %318 = vmatpush1.xpose.msra.mxu0 0.0
    %319 = vmatprep.subr.mxu0 0.0
    %320 = vmatpush1.xpose.msra.mxu0 0.0
    %321 = vmatprep.subr.mxu0 0.0
    %322 = vmatpush1.xpose.msra.mxu0 0.0
    %323 = vmatprep.subr.mxu0 0.0
    %324 = vmatpush1.xpose.msra.mxu0 0.0
    %325 = vmatprep.subr.mxu0 0.0
    %326 = vmatpush1.xpose.msra.mxu0 0.0
    %327 = vmatprep.subr.mxu0 0.0
    %328 = vmatpush1.xpose.msra.mxu0 0.0
    %329 = vmatprep.subr.mxu0 0.0
    %330 = vmatpush1.xpose.msra.mxu0 0.0
    %331 = vmatprep.mubr.f32.mxu0 0.0
    %332 = vmatmul.mubr.f32.gmra.mrb[0].mxu0 %v244
    %v333 = vpop.f32.mrb[0].mxu0
    %v334 = vadd.f32 0.0, %v333
    %v335 = vpop.f32.mrb[0].mxu0
    %336 = vmatprep.mubr.f32.mxu0 0.0
    %337 = vmatmul.mubr.f32.gmra.mrb[0].mxu0 %v247
    %v338 = vpop.f32.mrb[0].mxu0
    %v339 = vadd.f32 0.0, %v338
    %v340 = vpop.f32.mrb[0].mxu0
    %341 = vmatprep.mubr.f32.mxu0 0.0
    %342 = vmatmul.mubr.f32.gmra.mrb[0].mxu0 %v250
    %v343 = vpop.f32.mrb[0].mxu0
    %v344 = vadd.f32 0.0, %v343
    %v345 = vpop.f32.mrb[0].mxu0
    %346 = vmatprep.mubr.f32.mxu0 0.0
    %347 = vmatmul.mubr.f32.gmra.mrb[0].mxu0 %v253
    %v348 = vpop.f32.mrb[0].mxu0
    %v349 = vadd.f32 0.0, %v348
    %v350 = vpop.f32.mrb[0].mxu0
    %351 = vdwg.mxu0
    %v352 = vsub.f32 %v334, %v31
    %v353 = vsub.f32 %v339, %v32
    %v354 = vsub.f32 %v344, %v33
    %v355 = vsub.f32 %v349, %v34
    %v356 = vmul.f32 %v352, %v352
    %v357 = vmul.f32 %v353, %v353
    %v358 = vmul.f32 %v354, %v354
    %v359 = vmul.f32 %v355, %v355
    %v360 = vsel %vm40, %v356, 0.0
    %361 = vadd.xlane.f32.xlu0 %v360
    %v362 = vpop.xlane.xlu0 %361
    %v363 = vsel %vm40, %v357, 0.0
    %364 = vadd.xlane.f32.xlu0 %v363
    %v365 = vpop.xlane.xlu0 %364
    %v366 = vsel %vm40, %v358, 0.0
    %367 = vadd.xlane.f32.xlu0 %v366
    %v368 = vpop.xlane.xlu0 %367
    %v369 = vsel %vm40, %v359, 0.0
    %370 = vadd.xlane.f32.xlu0 %v369
    %v371 = vpop.xlane.xlu0 %370
    %v372 = vrcp.pop 32.0
    %v373 = vmul.f32 %v362, %v372
    %v374 = vmul.f32 %v365, %v372
    %v375 = vmul.f32 %v368, %v372
    %v376 = vmul.f32 %v371, %v372
    %377 = vst.msk [vmem:[%s3] sm:$0xff] %vm40, %v334
    %378 = vst.msk [vmem:[%s3 + $0x8] sm:$0xff] %vm40, %v339
    %379 = vst.msk [vmem:[%s3 + $0x10] sm:$0xff] %vm40, %v344
    %380 = vst.msk [vmem:[%s3 + $0x18] sm:$0xff] %vm40, %v349
    %vm381 = vcmask 7168
    %382 = vst.msk [vmem:[%s4] sm:$0xff] %vm381, %v373
    %383 = vst.msk [vmem:[%s4 + $0x8] sm:$0xff] %vm381, %v374
    %384 = vst.msk [vmem:[%s4 + $0x10] sm:$0xff] %vm381, %v375
    %385 = vst.msk [vmem:[%s4 + $0x18] sm:$0xff] %vm381, %v376
    %386 = vst.msk [vmem:[%s5] sm:$0xff] %vm381, %v185
    %387 = vst.msk [vmem:[%s5 + $0x8] sm:$0xff] %vm381, %v200
    %388 = vst.msk [vmem:[%s5 + $0x10] sm:$0xff] %vm381, %v215
    %389 = vst.msk [vmem:[%s5 + $0x18] sm:$0xff] %vm381, %v230
    // Predicated region
    $region18: #{quantize_forward.1} parent=1 // pred_check
      _
    $region19: #{quantize_forward.1} parent=1 // pred_check_branch
      %391 = sbr.rel (0) target = $region21
    $region20: #{quantize_forward.1} parent=1 // pred_region
      _
    $region21: #{quantize_forward.1} parent=1 // pred_fallthru
      _
    // Predicated region
    $region22: #{quantize_forward.1} parent=1 // pred_check
      _
    $region23: #{quantize_forward.1} parent=1 // pred_check_branch
      %393 = sbr.rel (0) target = $region25
    $region24: #{quantize_forward.1} parent=1 // pred_region
      _
    $region25: #{quantize_forward.1} parent=1 // pred_fallthru
      _
    // Predicated region
    $region26: #{quantize_forward.1} parent=1 // pred_check
      _
    $region27: #{quantize_forward.1} parent=1 // pred_check_branch
      %395 = sbr.rel (0) target = $region29
    $region28: #{quantize_forward.1} parent=1 // pred_region
      _
    $region29: #{quantize_forward.1} parent=1 // pred_fallthru
      _
    // Predicated region
    $region30: #{quantize_forward.1} parent=1 // pred_check
      _
    $region31: #{quantize_forward.1} parent=1 // pred_check_branch
      %397 = sbr.rel (0) target = $region33
    $region32: #{quantize_forward.1} parent=1 // pred_region
      _
    $region33: #{quantize_forward.1} parent=1 // pred_fallthru
      _
    // Predicated region
    $region34: #{quantize_forward.1} parent=1 // pred_check
      _
    $region35: #{quantize_forward.1} parent=1 // pred_check_branch
      %399 = sbr.rel (0) target = $region37
    $region36: #{quantize_forward.1} parent=1 // pred_region
      _
    $region37: #{quantize_forward.1} parent=1 // pred_fallthru
      _
    // Predicated region
    $region38: #{quantize_forward.1} parent=1 // pred_check
      _
    $region39: #{quantize_forward.1} parent=1 // pred_check_branch
      %401 = sbr.rel (0) target = $region41
    $region40: #{quantize_forward.1} parent=1 // pred_region
      _
    $region41: #{quantize_forward.1} parent=1 // pred_fallthru
      _
    %402 = vsyncpa [#allocation3], 1

</llo_original>
